<compile_context>
chip_gen: v7x
topology: tpu7x:2x2x1
jax: 0.10.0
libtpu: 0.0.40
codegen_flags: <defaults>
</compile_context>

<pallas_src>
import functools

import jax
import jax.numpy as jnp
from jax import lax
from jax.experimental import pallas as pl
from jax.experimental.pallas import tpu as pltpu


def _neumiss_mlp_kernel(x_ref, mu_ref, wn_ref, *rest, neumiss_depth):
    """One batch tile in transposed layout: features on sublanes, batch on lanes.

    rest = [W1, b1, W2, b2, ..., Wout_col, bout, out_ref]
      hidden Wi are torch-layout (out, in); bi are (out, 1) columns.
      Wout_col is the final Linear weight as an (last_in, 1) column; bout is (1, 1).
    """
    out_ref = rest[-1]
    lin_refs = rest[:-1]
    n_lin = len(lin_refs) // 2

    x = x_ref[...]                                   # (F, TB)
    mask = jnp.isnan(x)
    x0 = jnp.where(mask, jnp.zeros_like(x), x)       # nan_to_num
    nm = (~mask).astype(x.dtype)                     # float ~mask, (F, TB)
    mu = mu_ref[...]                                 # (F, 1), broadcast over lanes

    h0 = x0 - nm * mu
    wn = wn_ref[...]                                 # (F, F), torch (out, in) layout

    def neumiss_step(_, h):
        # row layout:  h' = nm * (h @ Wn^T) + h0   ==   col layout:  nm * (Wn @ h) + h0
        return nm * jnp.dot(wn, h, preferred_element_type=jnp.float32) + h0

    h = lax.fori_loop(0, neumiss_depth, neumiss_step, h0)

    # Hidden MLP layers: Linear + ReLU.  Lane-dense MXU N dimension (= TB).
    for li in range(n_lin - 1):
        w = lin_refs[2 * li][...]                    # (out, in)
        b = lin_refs[2 * li + 1][...]                # (out, 1)
        h = jnp.maximum(jnp.dot(w, h, preferred_element_type=jnp.float32) + b, 0.0)

    # Final Linear(last_in -> 1): VPU multiply + cross-sublane reduction instead of
    # an MXU pass with a 1-wide output; result is a lane-dense (1, TB) row.
    w_out = lin_refs[2 * (n_lin - 1)][...]           # (last_in, 1)
    b_out = lin_refs[2 * (n_lin - 1) + 1][...]       # (1, 1)
    y = jnp.sum(h * w_out, axis=0, keepdims=True) + b_out     # (1, TB)
    out_ref[...] = y.astype(out_ref.dtype)


def neumiss_mlp_forward(x, mu, wn, linears, *, neumiss_depth, block_batch=512):
    """Wrapper: transposes to batch-on-lanes layout, tiles the batch, calls pallas_call."""
    batch, n_features = x.shape
    tb = int(block_batch)
    b_pad = ((batch + tb - 1) // tb) * tb
    grid = (pl.cdiv(b_pad, tb),)

    # Transposed layout: (F, B) with batch on the lane axis.  Pad batch to a
    # multiple of the tile (padded columns are plain zeros -> no NaN handling needed).
    xt = x.T
    if b_pad != batch:
        xt = jnp.pad(xt, ((0, 0), (0, b_pad - batch)))

    inputs = [xt, mu.reshape(n_features, 1), wn]
    in_specs = [
        pl.BlockSpec((n_features, tb), lambda i: (0, i)),          # streamed x tile
        pl.BlockSpec((n_features, 1), lambda i: (0, 0)),           # resident mu
        pl.BlockSpec((n_features, n_features), lambda i: (0, 0)),  # resident Wn
    ]

    n_lin = len(linears)
    for li, (w, b) in enumerate(linears):            # torch layout: w (out, in), b (out,)
        if li < n_lin - 1:
            inputs.append(w)                                       # (out, in)
            inputs.append(b.reshape(-1, 1))                        # (out, 1)
            in_specs.append(pl.BlockSpec(w.shape, lambda i: (0, 0)))
            in_specs.append(pl.BlockSpec((w.shape[0], 1), lambda i: (0, 0)))
        else:
            # Final Linear(last_in -> 1): pass the weight as an (last_in, 1) column.
            inputs.append(w.reshape(-1, 1))                        # (last_in, 1)
            inputs.append(b.reshape(1, 1))                         # (1, 1)
            in_specs.append(pl.BlockSpec((w.shape[1], 1), lambda i: (0, 0)))
            in_specs.append(pl.BlockSpec((1, 1), lambda i: (0, 0)))

    kernel = functools.partial(_neumiss_mlp_kernel, neumiss_depth=neumiss_depth)

    out = pl.pallas_call(
        kernel,
        grid=grid,
        out_shape=jax.ShapeDtypeStruct((1, b_pad), x.dtype),
        in_specs=in_specs,
        out_specs=pl.BlockSpec((1, tb), lambda i: (0, i)),         # lane-dense store
        compiler_params=pltpu.CompilerParams(
            dimension_semantics=("parallel",),
            vmem_limit_bytes=32 * 1024 * 1024,
        ),
    )(*inputs)

    return out[0, :batch].squeeze()                  # matches torch .squeeze()


def neumiss_mlp_reference(x, mu, wn, linears, *, neumiss_depth):
    """Pure-JAX reference (row layout, mirrors the torch module exactly)."""
    mask = jnp.isnan(x)
    x0 = jnp.nan_to_num(x)
    nm = (~mask).astype(x.dtype)
    h0 = x0 - nm * mu
    h = h0
    for _ in range(neumiss_depth):
        h = nm * (h @ wn.T) + h0
    for i, (w, b) in enumerate(linears):
        h = h @ w.T + b
        if i < len(linears) - 1:
            h = jnp.maximum(h, 0.0)
    return h.squeeze()


def init_params(key, n_features, mlp_depth, mlp_width):
    """Deterministic synthetic parameter init (shapes match the torch module)."""
    ks = jax.random.split(key, 3 + 2 * (mlp_depth + 1))
    # NeuMiss block params
    mu = jax.random.normal(ks[0], (n_features,), jnp.float32)
    xav = 0.5 * (6.0 / (n_features + n_features)) ** 0.5   # xavier_uniform, gain=0.5
    wn = jax.random.uniform(ks[1], (n_features, n_features), jnp.float32, -xav, xav)

    # MLP params (PyTorch Linear convention: weight (out, in), bias (out,))
    linears = []
    if mlp_depth >= 1:
        dims = [(n_features, mlp_width)] + [(mlp_width, mlp_width)] * (mlp_depth - 1)
        last_in = mlp_width
    else:
        dims = []
        last_in = n_features
    dims.append((last_in, 1))
    for i, (fan_in, fan_out) in enumerate(dims):
        bnd = 1.0 / (fan_in ** 0.5)
        w = jax.random.uniform(ks[2 + 2 * i], (fan_out, fan_in), jnp.float32, -bnd, bnd)
        b = jax.random.uniform(ks[3 + 2 * i], (fan_out,), jnp.float32, -bnd, bnd)
        linears.append((w, b))
    return mu, wn, linears


if __name__ == "__main__":
    # Small shapes consistent with the module's forward: x is (batch, n_features).
    batch, n_features = 256, 16
    neumiss_depth, mlp_depth, mlp_width = 3, 2, 32

    key = jax.random.PRNGKey(0)
    k_x, k_m, k_p = jax.random.split(key, 3)

    x = jax.random.normal(k_x, (batch, n_features), jnp.float32)
    miss = jax.random.bernoulli(k_m, 0.3, (batch, n_features))
    x = jnp.where(miss, jnp.nan, x)                 # inject missing values (NaNs)

    mu, wn, linears = init_params(k_p, n_features, mlp_depth, mlp_width)

    out = neumiss_mlp_forward(x, mu, wn, linears,
                              neumiss_depth=neumiss_depth, block_batch=128)
    out = jax.block_until_ready(out)

    ref = neumiss_mlp_reference(x, mu, wn, linears, neumiss_depth=neumiss_depth)
    assert out.shape == (batch,), out.shape
    assert jnp.allclose(out, ref, rtol=1e-4, atol=1e-5), (out, ref)

    print("KERNEL_OK")
</pallas_src>

<mosaic_0001>
module attributes {stable_mosaic.version = 11 : i64} {
  func.func @_neumiss_mlp_kernel(%arg0: i32, %arg1: memref<16x128xf32, #tpu.memory_space<vmem>>, %arg2: memref<16x1xf32, #tpu.memory_space<vmem>>, %arg3: memref<16x16xf32, #tpu.memory_space<vmem>>, %arg4: memref<32x16xf32, #tpu.memory_space<vmem>>, %arg5: memref<32x1xf32, #tpu.memory_space<vmem>>, %arg6: memref<32x32xf32, #tpu.memory_space<vmem>>, %arg7: memref<32x1xf32, #tpu.memory_space<vmem>>, %arg8: memref<32x1xf32, #tpu.memory_space<vmem>>, %arg9: memref<1x1xf32, #tpu.memory_space<vmem>>, %arg10: memref<1x128xf32, #tpu.memory_space<vmem>>) attributes {dimension_semantics = [#tpu.dimension_semantics<parallel>], iteration_bounds = array<i64: 2>, scalar_prefetch = 0 : i64, scratch_operands = 0 : i64, tpu.core_type = #tpu.core_type<tc>, window_params = [{transform_indices = @transform_0, window_bounds = array<i64: 16, 128>}, {pipeline_mode = #tpu.pipeline_mode<synchronous>, transform_indices = @transform_1, window_bounds = array<i64: 16, 1>}, {pipeline_mode = #tpu.pipeline_mode<synchronous>, transform_indices = @transform_2, window_bounds = array<i64: 16, 16>}, {pipeline_mode = #tpu.pipeline_mode<synchronous>, transform_indices = @transform_3, window_bounds = array<i64: 32, 16>}, {pipeline_mode = #tpu.pipeline_mode<synchronous>, transform_indices = @transform_4, window_bounds = array<i64: 32, 1>}, {pipeline_mode = #tpu.pipeline_mode<synchronous>, transform_indices = @transform_5, window_bounds = array<i64: 32, 32>}, {pipeline_mode = #tpu.pipeline_mode<synchronous>, transform_indices = @transform_6, window_bounds = array<i64: 32, 1>}, {pipeline_mode = #tpu.pipeline_mode<synchronous>, transform_indices = @transform_7, window_bounds = array<i64: 32, 1>}, {pipeline_mode = #tpu.pipeline_mode<synchronous>, transform_indices = @transform_8, window_bounds = array<i64: 1, 1>}, {transform_indices = @transform_9, window_bounds = array<i64: 1, 128>}]} {
    %c0 = arith.constant 0 : index
    %c0_0 = arith.constant 0 : index
    %0 = vector.load %arg1[%c0, %c0_0] : memref<16x128xf32, #tpu.memory_space<vmem>>, vector<16x128xf32>
    %1 = arith.cmpf one, %0, %0 : vector<16x128xf32>
    %cst = arith.constant 0.000000e+00 : f32
    %2 = vector.broadcast %cst : f32 to vector<16x128xf32>
    %3 = arith.select %1, %2, %0 : vector<16x128xi1>, vector<16x128xf32>
    %cst_1 = arith.constant dense<true> : vector<16x128xi1>
    %4 = arith.xori %1, %cst_1 : vector<16x128xi1>
    %5 = arith.extui %4 : vector<16x128xi1> to vector<16x128xi32>
    %6 = arith.sitofp %5 : vector<16x128xi32> to vector<16x128xf32>
    %c0_2 = arith.constant 0 : index
    %c0_3 = arith.constant 0 : index
    %7 = vector.load %arg2[%c0_2, %c0_3] : memref<16x1xf32, #tpu.memory_space<vmem>>, vector<16x1xf32>
    %8 = vector.broadcast %7 : vector<16x1xf32> to vector<16x128xf32>
    %9 = arith.mulf %6, %8 : vector<16x128xf32>
    %10 = arith.subf %3, %9 : vector<16x128xf32>
    %c0_4 = arith.constant 0 : index
    %c0_5 = arith.constant 0 : index
    %11 = vector.load %arg3[%c0_4, %c0_5] : memref<16x16xf32, #tpu.memory_space<vmem>>, vector<16x16xf32>
    %c0_i32 = arith.constant 0 : i32
    %c3_i32 = arith.constant 3 : i32
    %12 = arith.addi %c0_i32, %c3_i32 : i32
    %c1_i32 = arith.constant 1 : i32
    %13 = scf.for %arg11 = %c0_i32 to %12 step %c1_i32 iter_args(%arg12 = %10) -> (vector<16x128xf32>)  : i32 {
      %cst_25 = arith.constant dense<0.000000e+00> : vector<16x128xf32>
      %37 = tpu.matmul %11, %arg12, %cst_25 {dimension_numbers = #tpu.dot_dimension_numbers<[1], [0], [0], [1], [0, 0, 1, 1], [], []>} : vector<16x16xf32>, vector<16x128xf32>, vector<16x128xf32> -> vector<16x128xf32>
      %38 = arith.mulf %6, %37 : vector<16x128xf32>
      %39 = arith.addf %38, %10 : vector<16x128xf32>
      scf.yield %39 : vector<16x128xf32>
    }
    %c0_6 = arith.constant 0 : index
    %c0_7 = arith.constant 0 : index
    %14 = vector.load %arg4[%c0_6, %c0_7] : memref<32x16xf32, #tpu.memory_space<vmem>>, vector<32x16xf32>
    %c0_8 = arith.constant 0 : index
    %c0_9 = arith.constant 0 : index
    %15 = vector.load %arg5[%c0_8, %c0_9] : memref<32x1xf32, #tpu.memory_space<vmem>>, vector<32x1xf32>
    %cst_10 = arith.constant dense<0.000000e+00> : vector<32x128xf32>
    %16 = tpu.matmul %14, %13, %cst_10 {dimension_numbers = #tpu.dot_dimension_numbers<[1], [0], [0], [1], [0, 0, 1, 1], [], []>} : vector<32x16xf32>, vector<16x128xf32>, vector<32x128xf32> -> vector<32x128xf32>
    %17 = vector.broadcast %15 : vector<32x1xf32> to vector<32x128xf32>
    %18 = arith.addf %16, %17 : vector<32x128xf32>
    %cst_11 = arith.constant 0.000000e+00 : f32
    %19 = vector.broadcast %cst_11 : f32 to vector<32x128xf32>
    %20 = arith.maximumf %18, %19 : vector<32x128xf32>
    %c0_12 = arith.constant 0 : index
    %c0_13 = arith.constant 0 : index
    %21 = vector.load %arg6[%c0_12, %c0_13] : memref<32x32xf32, #tpu.memory_space<vmem>>, vector<32x32xf32>
    %c0_14 = arith.constant 0 : index
    %c0_15 = arith.constant 0 : index
    %22 = vector.load %arg7[%c0_14, %c0_15] : memref<32x1xf32, #tpu.memory_space<vmem>>, vector<32x1xf32>
    %cst_16 = arith.constant dense<0.000000e+00> : vector<32x128xf32>
    %23 = tpu.matmul %21, %20, %cst_16 {dimension_numbers = #tpu.dot_dimension_numbers<[1], [0], [0], [1], [0, 0, 1, 1], [], []>} : vector<32x32xf32>, vector<32x128xf32>, vector<32x128xf32> -> vector<32x128xf32>
    %24 = vector.broadcast %22 : vector<32x1xf32> to vector<32x128xf32>
    %25 = arith.addf %23, %24 : vector<32x128xf32>
    %cst_17 = arith.constant 0.000000e+00 : f32
    %26 = vector.broadcast %cst_17 : f32 to vector<32x128xf32>
    %27 = arith.maximumf %25, %26 : vector<32x128xf32>
    %c0_18 = arith.constant 0 : index
    %c0_19 = arith.constant 0 : index
    %28 = vector.load %arg8[%c0_18, %c0_19] : memref<32x1xf32, #tpu.memory_space<vmem>>, vector<32x1xf32>
    %c0_20 = arith.constant 0 : index
    %c0_21 = arith.constant 0 : index
    %29 = vector.load %arg9[%c0_20, %c0_21] : memref<1x1xf32, #tpu.memory_space<vmem>>, vector<1x1xf32>
    %30 = vector.broadcast %28 : vector<32x1xf32> to vector<32x128xf32>
    %31 = arith.mulf %27, %30 : vector<32x128xf32>
    %cst_22 = arith.constant dense<0.000000e+00> : vector<128xf32>
    %32 = vector.multi_reduction <add>, %31, %cst_22 [0] : vector<32x128xf32> to vector<128xf32>
    %33 = vector.shape_cast %32 : vector<128xf32> to vector<1x128xf32>
    %34 = vector.broadcast %29 : vector<1x1xf32> to vector<1x128xf32>
    %35 = arith.addf %33, %34 : vector<1x128xf32>
    %c0_23 = arith.constant 0 : index
    %c0_24 = arith.constant 0 : index
    %36 = vector.load %arg10[%c0_23, %c0_24] : memref<1x128xf32, #tpu.memory_space<vmem>>, vector<1x128xf32>
    tpu.vector_store %arg10[%c0_23, %c0_24], %35 {strides = array<i32>} : memref<1x128xf32, #tpu.memory_space<vmem>>, vector<1x128xf32>,
    return
  }
  func.func @transform_0(%arg0: i32) -> (i32, i32) {
    %c0_i32 = arith.constant 0 : i32
    %c0_i32_0 = arith.constant 0 : i32
    return %c0_i32, %arg0 : i32, i32
  }
  func.func @transform_1(%arg0: i32) -> (i32, i32) {
    %c0_i32 = arith.constant 0 : i32
    %c0_i32_0 = arith.constant 0 : i32
    %c0_i32_1 = arith.constant 0 : i32
    return %c0_i32, %c0_i32_0 : i32, i32
  }
  func.func @transform_2(%arg0: i32) -> (i32, i32) {
    %c0_i32 = arith.constant 0 : i32
    %c0_i32_0 = arith.constant 0 : i32
    %c0_i32_1 = arith.constant 0 : i32
    return %c0_i32, %c0_i32_0 : i32, i32
  }
  func.func @transform_3(%arg0: i32) -> (i32, i32) {
    %c0_i32 = arith.constant 0 : i32
    %c0_i32_0 = arith.constant 0 : i32
    %c0_i32_1 = arith.constant 0 : i32
    return %c0_i32, %c0_i32_0 : i32, i32
  }
  func.func @transform_4(%arg0: i32) -> (i32, i32) {
    %c0_i32 = arith.constant 0 : i32
    %c0_i32_0 = arith.constant 0 : i32
    %c0_i32_1 = arith.constant 0 : i32
    return %c0_i32, %c0_i32_0 : i32, i32
  }
  func.func @transform_5(%arg0: i32) -> (i32, i32) {
    %c0_i32 = arith.constant 0 : i32
    %c0_i32_0 = arith.constant 0 : i32
    %c0_i32_1 = arith.constant 0 : i32
    return %c0_i32, %c0_i32_0 : i32, i32
  }
  func.func @transform_6(%arg0: i32) -> (i32, i32) {
    %c0_i32 = arith.constant 0 : i32
    %c0_i32_0 = arith.constant 0 : i32
    %c0_i32_1 = arith.constant 0 : i32
    return %c0_i32, %c0_i32_0 : i32, i32
  }
  func.func @transform_7(%arg0: i32) -> (i32, i32) {
    %c0_i32 = arith.constant 0 : i32
    %c0_i32_0 = arith.constant 0 : i32
    %c0_i32_1 = arith.constant 0 : i32
    return %c0_i32, %c0_i32_0 : i32, i32
  }
  func.func @transform_8(%arg0: i32) -> (i32, i32) {
    %c0_i32 = arith.constant 0 : i32
    %c0_i32_0 = arith.constant 0 : i32
    %c0_i32_1 = arith.constant 0 : i32
    return %c0_i32, %c0_i32_0 : i32, i32
  }
  func.func @transform_9(%arg0: i32) -> (i32, i32) {
    %c0_i32 = arith.constant 0 : i32
    %c0_i32_0 = arith.constant 0 : i32
    return %c0_i32, %arg0 : i32, i32
  }
}

</mosaic_0001>

<llo_original>
// kernel: tpu_custom_call.1
$region0: #{tpu_custom_call.1}
  #allocation0 [shape = 'u32[]', space=smem, size = 0x4, offset = 0x4, fixed_abs, tag = 'smem constant byte address 0x4 - core index']
  #allocation1 [shape = 'u32[144,128]{1,0:T(1,128)}', space=vmem, size = 0x12000, scoped, tag = 'internal scratch']
  #allocation2 [shape = 'f32[1,1]{1,0:T(1,128)S(1)}', space=vmem, size = 0x200, scoped, tag = 'scoped memory for tpu_custom_call.1']
  %s0 = inlined_call_operand.vmem [shape: f32[16,256], index: 0, kind: input, shape index: {}]
  %s1 = inlined_call_operand.vmem [shape: f32[16,1], index: 1, kind: input, shape index: {}]
  %s2 = inlined_call_operand.vmem [shape: f32[16,16], index: 2, kind: input, shape index: {}]
  %s3 = inlined_call_operand.vmem [shape: f32[32,16], index: 3, kind: input, shape index: {}]
  %s4 = inlined_call_operand.vmem [shape: f32[32,1], index: 4, kind: input, shape index: {}]
  %s5 = inlined_call_operand.vmem [shape: f32[32,32], index: 5, kind: input, shape index: {}]
  %s6 = inlined_call_operand.vmem [shape: f32[32,1], index: 6, kind: input, shape index: {}]
  %s7 = inlined_call_operand.vmem [shape: f32[32,1], index: 7, kind: input, shape index: {}]
  %s8 = inlined_call_operand.<no memory space> [shape: f32[1,1], index: 8, kind: input, shape index: {}]
  %s9 = inlined_call_operand.hbm [shape: f32[1,256], index: 9, kind: output, shape index: {}]
  %s10 = sld [smem:[#allocation0]]
  $region114: #{tpu_custom_call.1} parent=0
    _
  %s12 = ssub.s32 1, %s10
  %s13 = scalar_select 0, %s12, %s10
  %v14 = vstv %s8
  %15 = vst [vmem:[#allocation2] sm:$0x1] %v14
  $region1: #{tpu_custom_call.1} parent=0
    #allocation3 [shape = 'u8[16384]{0}', space=vmem, size = 0x4000, scoped, tag = 'input window, operand 0']
    #allocation4 [shape = 'u8[1024]{0}', space=vmem, size = 0x400, scoped, tag = 'output window, operand 0']
    #allocation5 [shape = 's32[2]{0}', space=sflag, size = 0x8, scoped, tag = 'scoped memory for tpu_custom_call.1']
    %16 = vsyncpa [#allocation5], 0
    %s17 = scalar_lea.sflag [#allocation5], 1
    %18 = vsyncpa %s17, 0
    loop: start=0, step=1, limit=4
    $region2: #{tpu_custom_call.1} parent=1 // loop_pre_header
      _
    $region3: #{tpu_custom_call.1} parent=1 // loop_header
      %s20 = sphi 0, %s24
      %p21 = scmp.ge.s32.totalorder %s20, 4
      %s30 = sphi 0, %s32
      %s33 = sphi 0, %s30
      %s34 = sphi 0, %s33
      %s50 = sphi 0, %s34
      %s54 = sphi 0, %s54
      %s56 = sphi 0, %s54
      %s57 = sphi 0, %s56
      %s71 = sphi 0, %s57
      %s75 = sphi 0, %s75
      %s77 = sphi 0, %s75
      %s78 = sphi 0, %s77
      %s92 = sphi 0, %s78
      %s96 = sphi 0, %s96
      %s98 = sphi 0, %s96
      %s99 = sphi 0, %s98
      %s113 = sphi 0, %s99
      %s117 = sphi 0, %s117
      %s119 = sphi 0, %s117
      %s120 = sphi 0, %s119
      %s134 = sphi 0, %s120
      %s138 = sphi 0, %s138
      %s140 = sphi 0, %s138
      %s141 = sphi 0, %s140
      %s155 = sphi 0, %s141
      %s159 = sphi 0, %s159
      %s161 = sphi 0, %s159
      %s162 = sphi 0, %s161
      %s176 = sphi 0, %s162
      %s180 = sphi 0, %s180
      %s182 = sphi 0, %s180
      %s183 = sphi 0, %s182
      %s197 = sphi 0, %s183
      %s201 = sphi 0, %s201
      %s203 = sphi 0, %s201
      %s204 = sphi 0, %s203
      %s218 = sphi 0, %s204
      %s224 = sphi 0, %s226
      %s227 = sphi 0, %s224
      %s228 = sphi 0, %s227
      %s244 = sphi 0, %s228
    $region4: #{tpu_custom_call.1} parent=1 // loop_header_branch
      %23 = sbr.rel (%p21) target = $region8
    $region5: #{tpu_custom_call.1} parent=1 // loop_body
      %s25 = ssub.s32 %s20, 1
      %s26 = ssub.s32 %s20, 2
      %s27 = sadd.s32 %s20, 1
      %s28 = ssub.s32 %s20, %s27
      %p29 = scmp.eq.s32.totalorder %s28, 0
      %s31 = sadd.s32 %s30, 1
      %s32 = scalar_select %p29, %s30, %s31
      %p35 = pneg %p29
      %p36 = scmp.eq.s32.totalorder %s20, 1
      %p37 = por %p35, %p36
      %p38 = scmp.ne.s32.totalorder %s30, %s33
      %p39 = scmp.eq.s32.totalorder %s20, 0
      %p40 = por %p38, %p39
      %p41 = scmp.ne.s32.totalorder %s30, %s33
      %p42 = scmp.eq.s32.totalorder %s25, 1
      %p43 = por %p41, %p42
      %p44 = scmp.ne.s32.totalorder %s33, %s34
      %p45 = scmp.eq.s32.totalorder %s25, 0
      %p46 = por %p44, %p45
      %p47 = scmp.ne.s32.totalorder %s33, %s34
      %p48 = scmp.eq.s32.totalorder %s26, 1
      %p49 = por %p47, %p48
      %p51 = scmp.ne.s32.totalorder %s34, %s50
      %p52 = scmp.eq.s32.totalorder %s26, 0
      %p53 = por %p51, %p52
      %s55 = sadd.s32 %s54, 1
      %p58 = scmp.eq.s32.totalorder %s20, 1
      %p59 = scmp.ne.s32.totalorder %s54, %s56
      %p60 = scmp.eq.s32.totalorder %s20, 0
      %p61 = por %p59, %p60
      %p62 = scmp.ne.s32.totalorder %s54, %s56
      %p63 = scmp.eq.s32.totalorder %s25, 1
      %p64 = por %p62, %p63
      %p65 = scmp.ne.s32.totalorder %s56, %s57
      %p66 = scmp.eq.s32.totalorder %s25, 0
      %p67 = por %p65, %p66
      %p68 = scmp.ne.s32.totalorder %s56, %s57
      %p69 = scmp.eq.s32.totalorder %s26, 1
      %p70 = por %p68, %p69
      %p72 = scmp.ne.s32.totalorder %s57, %s71
      %p73 = scmp.eq.s32.totalorder %s26, 0
      %p74 = por %p72, %p73
      %s76 = sadd.s32 %s75, 1
      %p79 = scmp.eq.s32.totalorder %s20, 1
      %p80 = scmp.ne.s32.totalorder %s75, %s77
      %p81 = scmp.eq.s32.totalorder %s20, 0
      %p82 = por %p80, %p81
      %p83 = scmp.ne.s32.totalorder %s75, %s77
      %p84 = scmp.eq.s32.totalorder %s25, 1
      %p85 = por %p83, %p84
      %p86 = scmp.ne.s32.totalorder %s77, %s78
      %p87 = scmp.eq.s32.totalorder %s25, 0
      %p88 = por %p86, %p87
      %p89 = scmp.ne.s32.totalorder %s77, %s78
      %p90 = scmp.eq.s32.totalorder %s26, 1
      %p91 = por %p89, %p90
      %p93 = scmp.ne.s32.totalorder %s78, %s92
      %p94 = scmp.eq.s32.totalorder %s26, 0
      %p95 = por %p93, %p94
      %s97 = sadd.s32 %s96, 1
      %p100 = scmp.eq.s32.totalorder %s20, 1
      %p101 = scmp.ne.s32.totalorder %s96, %s98
      %p102 = scmp.eq.s32.totalorder %s20, 0
      %p103 = por %p101, %p102
      %p104 = scmp.ne.s32.totalorder %s96, %s98
      %p105 = scmp.eq.s32.totalorder %s25, 1
      %p106 = por %p104, %p105
      %p107 = scmp.ne.s32.totalorder %s98, %s99
      %p108 = scmp.eq.s32.totalorder %s25, 0
      %p109 = por %p107, %p108
      %p110 = scmp.ne.s32.totalorder %s98, %s99
      %p111 = scmp.eq.s32.totalorder %s26, 1
      %p112 = por %p110, %p111
      %p114 = scmp.ne.s32.totalorder %s99, %s113
      %p115 = scmp.eq.s32.totalorder %s26, 0
      %p116 = por %p114, %p115
      %s118 = sadd.s32 %s117, 1
      %p121 = scmp.eq.s32.totalorder %s20, 1
      %p122 = scmp.ne.s32.totalorder %s117, %s119
      %p123 = scmp.eq.s32.totalorder %s20, 0
      %p124 = por %p122, %p123
      %p125 = scmp.ne.s32.totalorder %s117, %s119
      %p126 = scmp.eq.s32.totalorder %s25, 1
      %p127 = por %p125, %p126
      %p128 = scmp.ne.s32.totalorder %s119, %s120
      %p129 = scmp.eq.s32.totalorder %s25, 0
      %p130 = por %p128, %p129
      %p131 = scmp.ne.s32.totalorder %s119, %s120
      %p132 = scmp.eq.s32.totalorder %s26, 1
      %p133 = por %p131, %p132
      %p135 = scmp.ne.s32.totalorder %s120, %s134
      %p136 = scmp.eq.s32.totalorder %s26, 0
      %p137 = por %p135, %p136
      %s139 = sadd.s32 %s138, 1
      %p142 = scmp.eq.s32.totalorder %s20, 1
      %p143 = scmp.ne.s32.totalorder %s138, %s140
      %p144 = scmp.eq.s32.totalorder %s20, 0
      %p145 = por %p143, %p144
      %p146 = scmp.ne.s32.totalorder %s138, %s140
      %p147 = scmp.eq.s32.totalorder %s25, 1
      %p148 = por %p146, %p147
      %p149 = scmp.ne.s32.totalorder %s140, %s141
      %p150 = scmp.eq.s32.totalorder %s25, 0
      %p151 = por %p149, %p150
      %p152 = scmp.ne.s32.totalorder %s140, %s141
      %p153 = scmp.eq.s32.totalorder %s26, 1
      %p154 = por %p152, %p153
      %p156 = scmp.ne.s32.totalorder %s141, %s155
      %p157 = scmp.eq.s32.totalorder %s26, 0
      %p158 = por %p156, %p157
      %s160 = sadd.s32 %s159, 1
      %p163 = scmp.eq.s32.totalorder %s20, 1
      %p164 = scmp.ne.s32.totalorder %s159, %s161
      %p165 = scmp.eq.s32.totalorder %s20, 0
      %p166 = por %p164, %p165
      %p167 = scmp.ne.s32.totalorder %s159, %s161
      %p168 = scmp.eq.s32.totalorder %s25, 1
      %p169 = por %p167, %p168
      %p170 = scmp.ne.s32.totalorder %s161, %s162
      %p171 = scmp.eq.s32.totalorder %s25, 0
      %p172 = por %p170, %p171
      %p173 = scmp.ne.s32.totalorder %s161, %s162
      %p174 = scmp.eq.s32.totalorder %s26, 1
      %p175 = por %p173, %p174
      %p177 = scmp.ne.s32.totalorder %s162, %s176
      %p178 = scmp.eq.s32.totalorder %s26, 0
      %p179 = por %p177, %p178
      %s181 = sadd.s32 %s180, 1
      %p184 = scmp.eq.s32.totalorder %s20, 1
      %p185 = scmp.ne.s32.totalorder %s180, %s182
      %p186 = scmp.eq.s32.totalorder %s20, 0
      %p187 = por %p185, %p186
      %p188 = scmp.ne.s32.totalorder %s180, %s182
      %p189 = scmp.eq.s32.totalorder %s25, 1
      %p190 = por %p188, %p189
      %p191 = scmp.ne.s32.totalorder %s182, %s183
      %p192 = scmp.eq.s32.totalorder %s25, 0
      %p193 = por %p191, %p192
      %p194 = scmp.ne.s32.totalorder %s182, %s183
      %p195 = scmp.eq.s32.totalorder %s26, 1
      %p196 = por %p194, %p195
      %p198 = scmp.ne.s32.totalorder %s183, %s197
      %p199 = scmp.eq.s32.totalorder %s26, 0
      %p200 = por %p198, %p199
      %s202 = sadd.s32 %s201, 1
      %p205 = scmp.eq.s32.totalorder %s20, 1
      %p206 = scmp.ne.s32.totalorder %s201, %s203
      %p207 = scmp.eq.s32.totalorder %s20, 0
      %p208 = por %p206, %p207
      %p209 = scmp.ne.s32.totalorder %s201, %s203
      %p210 = scmp.eq.s32.totalorder %s25, 1
      %p211 = por %p209, %p210
      %p212 = scmp.ne.s32.totalorder %s203, %s204
      %p213 = scmp.eq.s32.totalorder %s25, 0
      %p214 = por %p212, %p213
      %p215 = scmp.ne.s32.totalorder %s203, %s204
      %p216 = scmp.eq.s32.totalorder %s26, 1
      %p217 = por %p215, %p216
      %p219 = scmp.ne.s32.totalorder %s204, %s218
      %p220 = scmp.eq.s32.totalorder %s26, 0
      %p221 = por %p219, %p220
      %s222 = ssub.s32 %s20, %s27
      %p223 = scmp.eq.s32.totalorder %s222, 0
      %s225 = sadd.s32 %s224, 1
      %s226 = scalar_select %p223, %s224, %s225
      %p229 = pneg %p223
      %p230 = scmp.eq.s32.totalorder %s20, 1
      %p231 = por %p229, %p230
      %p232 = scmp.ne.s32.totalorder %s224, %s227
      %p233 = scmp.eq.s32.totalorder %s20, 0
      %p234 = por %p232, %p233
      %p235 = scmp.ne.s32.totalorder %s224, %s227
      %p236 = scmp.eq.s32.totalorder %s25, 1
      %p237 = por %p235, %p236
      %p238 = scmp.ne.s32.totalorder %s227, %s228
      %p239 = scmp.eq.s32.totalorder %s25, 0
      %p240 = por %p238, %p239
      %p241 = scmp.ne.s32.totalorder %s227, %s228
      %p242 = scmp.eq.s32.totalorder %s26, 1
      %p243 = por %p241, %p242
      %p245 = scmp.ne.s32.totalorder %s228, %s244
      %p246 = scmp.eq.s32.totalorder %s26, 0
      %p247 = por %p245, %p246
      %p248 = scmp.le.s32.totalorder 1, %s20
      %p249 = scmp.lt.s32.totalorder %s20, 3
      %p250 = pnand %p248, %p249
      %p251 = pneg %p250
      // Predicated region
      $region9: #{tpu_custom_call.1} parent=5 // pred_check
        _
      $region10: #{tpu_custom_call.1} parent=5 // pred_check_branch
        %253 = sbr.rel (%p250) target = $region12
      $region11: #{tpu_custom_call.1} parent=5 // pred_region
        %s254 = ssub.s32 %s20, 1
        // Predicated region
        $region13: #{tpu_custom_call.1} parent=11 // pred_check
          %p255 = pneg %p67
        $region14: #{tpu_custom_call.1} parent=11 // pred_check_branch
          %257 = sbr.rel (%p255) target = $region16
        $region15: #{tpu_custom_call.1} parent=11 // pred_region
          _
        $region16: #{tpu_custom_call.1} parent=11 // pred_fallthru
          _
        // Predicated region
        $region17: #{tpu_custom_call.1} parent=11 // pred_check
          %p258 = pneg %p88
        $region18: #{tpu_custom_call.1} parent=11 // pred_check_branch
          %260 = sbr.rel (%p258) target = $region20
        $region19: #{tpu_custom_call.1} parent=11 // pred_region
          _
        $region20: #{tpu_custom_call.1} parent=11 // pred_fallthru
          _
        // Predicated region
        $region21: #{tpu_custom_call.1} parent=11 // pred_check
          %p261 = pneg %p109
        $region22: #{tpu_custom_call.1} parent=11 // pred_check_branch
          %263 = sbr.rel (%p261) target = $region24
        $region23: #{tpu_custom_call.1} parent=11 // pred_region
          _
        $region24: #{tpu_custom_call.1} parent=11 // pred_fallthru
          _
        // Predicated region
        $region25: #{tpu_custom_call.1} parent=11 // pred_check
          %p264 = pneg %p130
        $region26: #{tpu_custom_call.1} parent=11 // pred_check_branch
          %266 = sbr.rel (%p264) target = $region28
        $region27: #{tpu_custom_call.1} parent=11 // pred_region
          _
        $region28: #{tpu_custom_call.1} parent=11 // pred_fallthru
          _
        // Predicated region
        $region29: #{tpu_custom_call.1} parent=11 // pred_check
          %p267 = pneg %p151
        $region30: #{tpu_custom_call.1} parent=11 // pred_check_branch
          %269 = sbr.rel (%p267) target = $region32
        $region31: #{tpu_custom_call.1} parent=11 // pred_region
          _
        $region32: #{tpu_custom_call.1} parent=11 // pred_fallthru
          _
        // Predicated region
        $region33: #{tpu_custom_call.1} parent=11 // pred_check
          %p270 = pneg %p172
        $region34: #{tpu_custom_call.1} parent=11 // pred_check_branch
          %272 = sbr.rel (%p270) target = $region36
        $region35: #{tpu_custom_call.1} parent=11 // pred_region
          _
        $region36: #{tpu_custom_call.1} parent=11 // pred_fallthru
          _
        // Predicated region
        $region37: #{tpu_custom_call.1} parent=11 // pred_check
          %p273 = pneg %p193
        $region38: #{tpu_custom_call.1} parent=11 // pred_check_branch
          %275 = sbr.rel (%p273) target = $region40
        $region39: #{tpu_custom_call.1} parent=11 // pred_region
          _
        $region40: #{tpu_custom_call.1} parent=11 // pred_fallthru
          _
        // Predicated region
        $region41: #{tpu_custom_call.1} parent=11 // pred_check
          %p276 = pneg %p214
        $region42: #{tpu_custom_call.1} parent=11 // pred_check_branch
          %278 = sbr.rel (%p276) target = $region44
        $region43: #{tpu_custom_call.1} parent=11 // pred_region
          _
        $region44: #{tpu_custom_call.1} parent=11 // pred_fallthru
          _
      $region12: #{tpu_custom_call.1} parent=5 // pred_fallthru
        _
      %p279 = scmp.lt.s32.totalorder %s20, 2
      // Predicated region
      $region45: #{tpu_custom_call.1} parent=5 // pred_check
        %p280 = pneg %p279
      $region46: #{tpu_custom_call.1} parent=5 // pred_check_branch
        %282 = sbr.rel (%p280) target = $region48
      $region47: #{tpu_custom_call.1} parent=5 // pred_region
        // Predicated region
        $region49: #{tpu_custom_call.1} parent=47 // pred_check
          %p283 = pneg %p40
        $region50: #{tpu_custom_call.1} parent=47 // pred_check_branch
          %285 = sbr.rel (%p283) target = $region52
        $region51: #{tpu_custom_call.1} parent=47 // pred_region
          %s286 = sand.u32 %s30, 1
          %s287 = sand.u32 %s30, 1
          %s288 = smul.addr %s287, 16
          %s289 = scalar_lea.vmem [#allocation3], %s288
          %s290 = smul.addr %s20, 8
          %s291 = scalar_lea.vmem %s0, %s290
          // Predicated region
          $region53: #{tpu_custom_call.1} parent=51 // pred_check
            _
          $region54: #{tpu_custom_call.1} parent=51 // pred_check_branch
            %293 = sbr.rel (0) target = $region56
          $region55: #{tpu_custom_call.1} parent=51 // pred_region
            // Predicated region
            $region57: #{tpu_custom_call.1} parent=55 // pred_check
              _
            $region58: #{tpu_custom_call.1} parent=55 // pred_check_branch
              %295 = sbr.rel (0) target = $region60
            $region59: #{tpu_custom_call.1} parent=55 // pred_region
              // Predicated region
              $region72: #{tpu_custom_call.1} parent=59 // pred_check
                _
              $region73: #{tpu_custom_call.1} parent=59 // pred_check_branch
                %312 = sbr.rel (0) target = $region75
              $region74: #{tpu_custom_call.1} parent=59 // pred_region
                loop: start=0, step=1, limit=1
                $region76: #{tpu_custom_call.1} parent=74 // loop_pre_header
                  _
                $region77: #{tpu_custom_call.1} parent=74 // loop_header
                  %s314 = sphi 0, %s318
                  %p315 = scmp.ge.s32.totalorder %s314, 1
                  %s319 = sphi %s291, %s291
                  %s320 = sphi %s289, %s289
                $region78: #{tpu_custom_call.1} parent=74 // loop_header_branch
                  %317 = sbr.rel (%p315) target = $region82
                $region79: #{tpu_custom_call.1} parent=74 // loop_body
                  %v321 = vld [vmem:[%s319] sm:$0xff]
                  %322 = vst [vmem:[%s320] sm:$0xff] %v321
                  %v323 = vld [vmem:[%s319 + $0x10] sm:$0xff]
                  %324 = vst [vmem:[%s320 + $0x8] sm:$0xff] %v323
                $region80: #{tpu_custom_call.1} parent=74 // loop_footer
                  %s318 = sadd.s32 1, %s314
                $region81: #{tpu_custom_call.1} parent=74 // loop_footer_branch
                  %313 = sbr.rel target = $region77
                $region82: #{tpu_custom_call.1} parent=74 // loop_exit
                  _
              $region75: #{tpu_custom_call.1} parent=59 // pred_fallthru
                _
              // Predicated region
              $region83: #{tpu_custom_call.1} parent=59 // pred_check
                _
              $region84: #{tpu_custom_call.1} parent=59 // pred_check_branch
                %326 = sbr.rel target = $region86
              $region85: #{tpu_custom_call.1} parent=59 // pred_region
                _
              $region86: #{tpu_custom_call.1} parent=59 // pred_fallthru
                _
            $region60: #{tpu_custom_call.1} parent=55 // pred_fallthru
              _
            // Predicated region
            $region61: #{tpu_custom_call.1} parent=55 // pred_check
              _
            $region62: #{tpu_custom_call.1} parent=55 // pred_check_branch
              %297 = sbr.rel target = $region64
            $region63: #{tpu_custom_call.1} parent=55 // pred_region
              loop: start=0, step=1, limit=1
              $region65: #{tpu_custom_call.1} parent=63 // loop_pre_header
                _
              $region66: #{tpu_custom_call.1} parent=63 // loop_header
                %s300 = sphi 0, %s304
                %p301 = scmp.ge.s32.totalorder %s300, 1
                %s305 = sphi %s291, %s291
                %s306 = sphi %s289, %s289
              $region67: #{tpu_custom_call.1} parent=63 // loop_header_branch
                %303 = sbr.rel (%p301) target = $region71
              $region68: #{tpu_custom_call.1} parent=63 // loop_body
                %v307 = vld [vmem:[%s305] sm:$0xff]
                %308 = vst [vmem:[%s306] sm:$0xff] %v307
                %v309 = vld [vmem:[%s305 + $0x10] sm:$0xff]
                %310 = vst [vmem:[%s306 + $0x8] sm:$0xff] %v309
              $region69: #{tpu_custom_call.1} parent=63 // loop_footer
                %s304 = sadd.s32 1, %s300
              $region70: #{tpu_custom_call.1} parent=63 // loop_footer_branch
                %299 = sbr.rel target = $region66
              $region71: #{tpu_custom_call.1} parent=63 // loop_exit
                _
            $region64: #{tpu_custom_call.1} parent=55 // pred_fallthru
              _
          $region56: #{tpu_custom_call.1} parent=51 // pred_fallthru
            _
          %327 = vnop
        $region52: #{tpu_custom_call.1} parent=47 // pred_fallthru
          _
      $region48: #{tpu_custom_call.1} parent=5 // pred_fallthru
        _
      %p328 = scmp.le.s32.totalorder 1, %s20
      %p329 = scmp.lt.s32.totalorder %s20, 3
      %p330 = pnand %p328, %p329
      %p331 = pneg %p330
      // Predicated region
      $region87: #{tpu_custom_call.1} parent=5 // pred_check
        _
      $region88: #{tpu_custom_call.1} parent=5 // pred_check_branch
        %333 = sbr.rel (%p330) target = $region90
      $region89: #{tpu_custom_call.1} parent=5 // pred_region
        %s334 = ssub.s32 %s20, 1
        %s335 = sand.u32 %s33, 1
        %s336 = sand.u32 %s33, 1
        %s337 = smul.addr %s336, 16
        %s338 = scalar_lea.vmem [#allocation3], %s337
        // Predicated region
        $region91: #{tpu_custom_call.1} parent=89 // pred_check
          %p339 = pneg %p46
        $region92: #{tpu_custom_call.1} parent=89 // pred_check_branch
          %341 = sbr.rel (%p339) target = $region94
        $region93: #{tpu_custom_call.1} parent=89 // pred_region
          _
        $region94: #{tpu_custom_call.1} parent=89 // pred_fallthru
          _
        %s342 = sand.u32 %s33, 1
        %s343 = sand.u32 %s33, 1
        %s344 = smul.addr %s343, 16
        %s345 = scalar_lea.vmem [#allocation3], %s344
        %p346 = pneg %p46
        %p347 = pneg %p43
        %p348 = pneg %p67
        %p349 = pneg %p64
        %p350 = pneg %p88
        %p351 = pneg %p85
        %p352 = pneg %p109
        %p353 = pneg %p106
        %p354 = pneg %p130
        %p355 = pneg %p127
        %p356 = pneg %p151
        %p357 = pneg %p148
        %p358 = pneg %p172
        %p359 = pneg %p169
        %p360 = pneg %p193
        %p361 = pneg %p190
        %p362 = pneg %p214
        %p363 = pneg %p211
        %p364 = pneg %p240
        %p365 = pneg %p237
        %s366 = sand.u32 %s227, 1
        %s367 = scalar_lea.sflag [#allocation5], %s366
        %s368 = sand.u32 %s227, 1
        %s369 = scalar_lea.vmem [#allocation4], %s368
        %v370 = vld [vmem:[%s338] sm:$0xff]
        %v371 = vld [vmem:[%s338 + $0x8] sm:$0xff]
        %vm372 = vcmp.ne.f32.partialorder %v370, %v370
        %vm373 = vcmp.ne.f32.partialorder %v371, %v371
        %v374 = vsel %vm372, 0.0, %v370
        %v375 = vsel %vm373, 0.0, %v371
        %vm376 = vmxor %vm372, 1
        %vm377 = vmxor %vm373, 1
        %v378 = vsel %vm376, 1, 0
        %v379 = vsel %vm377, 1, 0
        %v380 = vcvt.s32.f32 %v378
        %v381 = vcvt.s32.f32 %v379
        %v382 = vld [vmem:[%s1] sm:$0xff]
        %v383 = vld [vmem:[%s1 + $0x8] sm:$0xff]
        %385 = vset.pattern.permute.xlu0 0
        %386 = vperm.xlu0 %385, %v382
        %v387 = vpop.permute.xlu0 %386
        %390 = vset.pattern.permute.xlu0 0
        %391 = vperm.xlu0 %390, %v383
        %v392 = vpop.permute.xlu0 %391
        %v394 = vmul.f32 %v380, %v387
        %v395 = vmul.f32 %v381, %v392
        %v396 = vsub.f32 %v374, %v394
        %v397 = vsub.f32 %v375, %v395
        %v398 = vld [vmem:[%s2] sm:$0xff]
        %v399 = vld [vmem:[%s2 + $0x8] sm:$0xff]
        loop: start=0, step=1, limit=3
        $region95: #{tpu_custom_call.1} parent=89 // loop_pre_header
          _
        $region96: #{tpu_custom_call.1} parent=89 // loop_header
          %s401 = sphi 0, %s405
          %p402 = scmp.ge.s32.totalorder %s401, 3
          %v406 = vphi %v396, %v492
          %v407 = vphi %v397, %v493
        $region97: #{tpu_custom_call.1} parent=89 // loop_header_branch
          %404 = sbr.rel (%p402) target = $region101
        $region98: #{tpu_custom_call.1} parent=89 // loop_body
          %vm408 = vcmask 130048
          %v410 = vsel %vm408, %v398, 0
          %v413 = vsel %vm408, %v399, 0
          %415 = vmatprep.subr.mxu0 0.0
          %416 = vmatpush1.msra.mxu0 %v406
          %417 = vmatprep.subr.mxu0 0.0
          %418 = vmatpush1.msra.mxu0 %v407
          %419 = vmatprep.subr.mxu0 0.0
          %420 = vmatpush1.msra.mxu0 0.0
          %421 = vmatprep.subr.mxu0 0.0
          %422 = vmatpush1.msra.mxu0 0.0
          %423 = vmatprep.subr.mxu0 0.0
          %424 = vmatpush1.msra.mxu0 0.0
          %425 = vmatprep.subr.mxu0 0.0
          %426 = vmatpush1.msra.mxu0 0.0
          %427 = vmatprep.subr.mxu0 0.0
          %428 = vmatpush1.msra.mxu0 0.0
          %429 = vmatprep.subr.mxu0 0.0
          %430 = vmatpush1.msra.mxu0 0.0
          %431 = vmatprep.subr.mxu0 0.0
          %432 = vmatpush1.msra.mxu0 0.0
          %433 = vmatprep.subr.mxu0 0.0
          %434 = vmatpush1.msra.mxu0 0.0
          %435 = vmatprep.subr.mxu0 0.0
          %436 = vmatpush1.msra.mxu0 0.0
          %437 = vmatprep.subr.mxu0 0.0
          %438 = vmatpush1.msra.mxu0 0.0
          %439 = vmatprep.subr.mxu0 0.0
          %440 = vmatpush1.msra.mxu0 0.0
          %441 = vmatprep.subr.mxu0 0.0
          %442 = vmatpush1.msra.mxu0 0.0
          %443 = vmatprep.subr.mxu0 0.0
          %444 = vmatpush1.msra.mxu0 0.0
          %445 = vmatprep.subr.mxu0 0.0
          %446 = vmatpush1.msra.mxu0 0.0
          %447 = vmatprep.subr.mxu0 0.0
          %448 = vmatpush1.msra.mxu0 0.0
          %449 = vmatprep.subr.mxu0 0.0
          %450 = vmatpush1.msra.mxu0 0.0
          %451 = vmatprep.subr.mxu0 0.0
          %452 = vmatpush1.msra.mxu0 0.0
          %453 = vmatprep.subr.mxu0 0.0
          %454 = vmatpush1.msra.mxu0 0.0
          %455 = vmatprep.subr.mxu0 0.0
          %456 = vmatpush1.msra.mxu0 0.0
          %457 = vmatprep.subr.mxu0 0.0
          %458 = vmatpush1.msra.mxu0 0.0
          %459 = vmatprep.subr.mxu0 0.0
          %460 = vmatpush1.msra.mxu0 0.0
          %461 = vmatprep.subr.mxu0 0.0
          %462 = vmatpush1.msra.mxu0 0.0
          %463 = vmatprep.subr.mxu0 0.0
          %464 = vmatpush1.msra.mxu0 0.0
          %465 = vmatprep.subr.mxu0 0.0
          %466 = vmatpush1.msra.mxu0 0.0
          %467 = vmatprep.subr.mxu0 0.0
          %468 = vmatpush1.msra.mxu0 0.0
          %469 = vmatprep.subr.mxu0 0.0
          %470 = vmatpush1.msra.mxu0 0.0
          %471 = vmatprep.subr.mxu0 0.0
          %472 = vmatpush1.msra.mxu0 0.0
          %473 = vmatprep.subr.mxu0 0.0
          %474 = vmatpush1.msra.mxu0 0.0
          %475 = vmatprep.subr.mxu0 0.0
          %476 = vmatpush1.msra.mxu0 0.0
          %477 = vmatprep.subr.mxu0 0.0
          %478 = vmatpush1.msra.mxu0 0.0
          %479 = vmatprep.mubr.f32.mxu0 0.0
          %480 = vmatmul.mubr.f32.gmra.mrb[0].mxu0 %v410
          %v481 = vpop.f32.mrb[0].mxu0
          %v482 = vadd.f32 0.0, %v481
          %v483 = vpop.f32.mrb[0].mxu0
          %484 = vmatprep.mubr.f32.mxu0 0.0
          %485 = vmatmul.mubr.f32.gmra.mrb[0].mxu0 %v413
          %v486 = vpop.f32.mrb[0].mxu0
          %v487 = vadd.f32 0.0, %v486
          %v488 = vpop.f32.mrb[0].mxu0
          %489 = vdwg.mxu0
          %v490 = vmul.f32 %v380, %v482
          %v491 = vmul.f32 %v381, %v487
          %v492 = vadd.f32 %v490, %v396
          %v493 = vadd.f32 %v491, %v397
        $region99: #{tpu_custom_call.1} parent=89 // loop_footer
          %s405 = sadd.s32 1, %s401
        $region100: #{tpu_custom_call.1} parent=89 // loop_footer_branch
          %400 = sbr.rel target = $region96
        $region101: #{tpu_custom_call.1} parent=89 // loop_exit
          _
        %v494 = vld [vmem:[%s3] sm:$0xff]
        %v495 = vld [vmem:[%s3 + $0x8] sm:$0xff]
        %v496 = vld [vmem:[%s3 + $0x10] sm:$0xff]
        %v497 = vld [vmem:[%s3 + $0x18] sm:$0xff]
        %v498 = vld [vmem:[%s4] sm:$0xff]
        %v499 = vld [vmem:[%s4 + $0x8] sm:$0xff]
        %v500 = vld [vmem:[%s4 + $0x10] sm:$0xff]
        %v501 = vld [vmem:[%s4 + $0x18] sm:$0xff]
        %503 = vset.pattern.permute.xlu0 0
        %504 = vperm.xlu0 %503, %v498
        %v505 = vpop.permute.xlu0 %504
        %508 = vset.pattern.permute.xlu0 0
        %509 = vperm.xlu0 %508, %v499
        %v510 = vpop.permute.xlu0 %509
        %513 = vset.pattern.permute.xlu0 0
        %514 = vperm.xlu0 %513, %v500
        %v515 = vpop.permute.xlu0 %514
        %518 = vset.pattern.permute.xlu0 0
        %519 = vperm.xlu0 %518, %v501
        %v520 = vpop.permute.xlu0 %519
        %vm522 = vcmask 130048
        %v524 = vsel %vm522, %v494, 0
        %v527 = vsel %vm522, %v495, 0
        %v530 = vsel %vm522, %v496, 0
        %v533 = vsel %vm522, %v497, 0
        %535 = vmatprep.subr.mxu0 0.0
        %536 = vmatpush1.msra.mxu0 %v406
        %537 = vmatprep.subr.mxu0 0.0
        %538 = vmatpush1.msra.mxu0 %v407
        %539 = vmatprep.subr.mxu0 0.0
        %540 = vmatpush1.msra.mxu0 0.0
        %541 = vmatprep.subr.mxu0 0.0
        %542 = vmatpush1.msra.mxu0 0.0
        %543 = vmatprep.subr.mxu0 0.0
        %544 = vmatpush1.msra.mxu0 0.0
        %545 = vmatprep.subr.mxu0 0.0
        %546 = vmatpush1.msra.mxu0 0.0
        %547 = vmatprep.subr.mxu0 0.0
        %548 = vmatpush1.msra.mxu0 0.0
        %549 = vmatprep.subr.mxu0 0.0
        %550 = vmatpush1.msra.mxu0 0.0
        %551 = vmatprep.subr.mxu0 0.0
        %552 = vmatpush1.msra.mxu0 0.0
        %553 = vmatprep.subr.mxu0 0.0
        %554 = vmatpush1.msra.mxu0 0.0
        %555 = vmatprep.subr.mxu0 0.0
        %556 = vmatpush1.msra.mxu0 0.0
        %557 = vmatprep.subr.mxu0 0.0
        %558 = vmatpush1.msra.mxu0 0.0
        %559 = vmatprep.subr.mxu0 0.0
        %560 = vmatpush1.msra.mxu0 0.0
        %561 = vmatprep.subr.mxu0 0.0
        %562 = vmatpush1.msra.mxu0 0.0
        %563 = vmatprep.subr.mxu0 0.0
        %564 = vmatpush1.msra.mxu0 0.0
        %565 = vmatprep.subr.mxu0 0.0
        %566 = vmatpush1.msra.mxu0 0.0
        %567 = vmatprep.subr.mxu0 0.0
        %568 = vmatpush1.msra.mxu0 0.0
        %569 = vmatprep.subr.mxu0 0.0
        %570 = vmatpush1.msra.mxu0 0.0
        %571 = vmatprep.subr.mxu0 0.0
        %572 = vmatpush1.msra.mxu0 0.0
        %573 = vmatprep.subr.mxu0 0.0
        %574 = vmatpush1.msra.mxu0 0.0
        %575 = vmatprep.subr.mxu0 0.0
        %576 = vmatpush1.msra.mxu0 0.0
        %577 = vmatprep.subr.mxu0 0.0
        %578 = vmatpush1.msra.mxu0 0.0
        %579 = vmatprep.subr.mxu0 0.0
        %580 = vmatpush1.msra.mxu0 0.0
        %581 = vmatprep.subr.mxu0 0.0
        %582 = vmatpush1.msra.mxu0 0.0
        %583 = vmatprep.subr.mxu0 0.0
        %584 = vmatpush1.msra.mxu0 0.0
        %585 = vmatprep.subr.mxu0 0.0
        %586 = vmatpush1.msra.mxu0 0.0
        %587 = vmatprep.subr.mxu0 0.0
        %588 = vmatpush1.msra.mxu0 0.0
        %589 = vmatprep.subr.mxu0 0.0
        %590 = vmatpush1.msra.mxu0 0.0
        %591 = vmatprep.subr.mxu0 0.0
        %592 = vmatpush1.msra.mxu0 0.0
        %593 = vmatprep.subr.mxu0 0.0
        %594 = vmatpush1.msra.mxu0 0.0
        %595 = vmatprep.subr.mxu0 0.0
        %596 = vmatpush1.msra.mxu0 0.0
        %597 = vmatprep.subr.mxu0 0.0
        %598 = vmatpush1.msra.mxu0 0.0
        %599 = vmatprep.mubr.f32.mxu0 0.0
        %600 = vmatmul.mubr.f32.gmra.mrb[0].mxu0 %v524
        %v601 = vpop.f32.mrb[0].mxu0
        %v602 = vadd.f32 %v505, %v601
        %v603 = vpop.f32.mrb[0].mxu0
        %604 = vmatprep.mubr.f32.mxu0 0.0
        %605 = vmatmul.mubr.f32.gmra.mrb[0].mxu0 %v527
        %v606 = vpop.f32.mrb[0].mxu0
        %v607 = vadd.f32 %v510, %v606
        %v608 = vpop.f32.mrb[0].mxu0
        %609 = vmatprep.mubr.f32.mxu0 0.0
        %610 = vmatmul.mubr.f32.gmra.mrb[0].mxu0 %v530
        %v611 = vpop.f32.mrb[0].mxu0
        %v612 = vadd.f32 %v515, %v611
        %v613 = vpop.f32.mrb[0].mxu0
        %614 = vmatprep.mubr.f32.mxu0 0.0
        %615 = vmatmul.mubr.f32.gmra.mrb[0].mxu0 %v533
        %v616 = vpop.f32.mrb[0].mxu0
        %v617 = vadd.f32 %v520, %v616
        %v618 = vpop.f32.mrb[0].mxu0
        %619 = vdwg.mxu0
        %v620 = vmax.f32 %v602, 0.0
        %v621 = vmax.f32 %v607, 0.0
        %v622 = vmax.f32 %v612, 0.0
        %v623 = vmax.f32 %v617, 0.0
        %v624 = vld [vmem:[%s5] sm:$0xff]
        %v625 = vld [vmem:[%s5 + $0x8] sm:$0xff]
        %v626 = vld [vmem:[%s5 + $0x10] sm:$0xff]
        %v627 = vld [vmem:[%s5 + $0x18] sm:$0xff]
        %v628 = vld [vmem:[%s6] sm:$0xff]
        %v629 = vld [vmem:[%s6 + $0x8] sm:$0xff]
        %v630 = vld [vmem:[%s6 + $0x10] sm:$0xff]
        %v631 = vld [vmem:[%s6 + $0x18] sm:$0xff]
        %633 = vset.pattern.permute.xlu0 0
        %634 = vperm.xlu0 %633, %v628
        %v635 = vpop.permute.xlu0 %634
        %638 = vset.pattern.permute.xlu0 0
        %639 = vperm.xlu0 %638, %v629
        %v640 = vpop.permute.xlu0 %639
        %643 = vset.pattern.permute.xlu0 0
        %644 = vperm.xlu0 %643, %v630
        %v645 = vpop.permute.xlu0 %644
        %648 = vset.pattern.permute.xlu0 0
        %649 = vperm.xlu0 %648, %v631
        %v650 = vpop.permute.xlu0 %649
        %vm652 = vcmask 261120
        %v654 = vsel %vm652, %v624, 0
        %v657 = vsel %vm652, %v625, 0
        %v660 = vsel %vm652, %v626, 0
        %v663 = vsel %vm652, %v627, 0
        %665 = vmatprep.subr.mxu0 0.0
        %666 = vmatpush1.msra.mxu0 %v620
        %667 = vmatprep.subr.mxu0 0.0
        %668 = vmatpush1.msra.mxu0 %v621
        %669 = vmatprep.subr.mxu0 0.0
        %670 = vmatpush1.msra.mxu0 %v622
        %671 = vmatprep.subr.mxu0 0.0
        %672 = vmatpush1.msra.mxu0 %v623
        %673 = vmatprep.subr.mxu0 0.0
        %674 = vmatpush1.msra.mxu0 0.0
        %675 = vmatprep.subr.mxu0 0.0
        %676 = vmatpush1.msra.mxu0 0.0
        %677 = vmatprep.subr.mxu0 0.0
        %678 = vmatpush1.msra.mxu0 0.0
        %679 = vmatprep.subr.mxu0 0.0
        %680 = vmatpush1.msra.mxu0 0.0
        %681 = vmatprep.subr.mxu0 0.0
        %682 = vmatpush1.msra.mxu0 0.0
        %683 = vmatprep.subr.mxu0 0.0
        %684 = vmatpush1.msra.mxu0 0.0
        %685 = vmatprep.subr.mxu0 0.0
        %686 = vmatpush1.msra.mxu0 0.0
        %687 = vmatprep.subr.mxu0 0.0
        %688 = vmatpush1.msra.mxu0 0.0
        %689 = vmatprep.subr.mxu0 0.0
        %690 = vmatpush1.msra.mxu0 0.0
        %691 = vmatprep.subr.mxu0 0.0
        %692 = vmatpush1.msra.mxu0 0.0
        %693 = vmatprep.subr.mxu0 0.0
        %694 = vmatpush1.msra.mxu0 0.0
        %695 = vmatprep.subr.mxu0 0.0
        %696 = vmatpush1.msra.mxu0 0.0
        %697 = vmatprep.subr.mxu0 0.0
        %698 = vmatpush1.msra.mxu0 0.0
        %699 = vmatprep.subr.mxu0 0.0
        %700 = vmatpush1.msra.mxu0 0.0
        %701 = vmatprep.subr.mxu0 0.0
        %702 = vmatpush1.msra.mxu0 0.0
        %703 = vmatprep.subr.mxu0 0.0
        %704 = vmatpush1.msra.mxu0 0.0
        %705 = vmatprep.subr.mxu0 0.0
        %706 = vmatpush1.msra.mxu0 0.0
        %707 = vmatprep.subr.mxu0 0.0
        %708 = vmatpush1.msra.mxu0 0.0
        %709 = vmatprep.subr.mxu0 0.0
        %710 = vmatpush1.msra.mxu0 0.0
        %711 = vmatprep.subr.mxu0 0.0
        %712 = vmatpush1.msra.mxu0 0.0
        %713 = vmatprep.subr.mxu0 0.0
        %714 = vmatpush1.msra.mxu0 0.0
        %715 = vmatprep.subr.mxu0 0.0
        %716 = vmatpush1.msra.mxu0 0.0
        %717 = vmatprep.subr.mxu0 0.0
        %718 = vmatpush1.msra.mxu0 0.0
        %719 = vmatprep.subr.mxu0 0.0
        %720 = vmatpush1.msra.mxu0 0.0
        %721 = vmatprep.subr.mxu0 0.0
        %722 = vmatpush1.msra.mxu0 0.0
        %723 = vmatprep.subr.mxu0 0.0
        %724 = vmatpush1.msra.mxu0 0.0
        %725 = vmatprep.subr.mxu0 0.0
        %726 = vmatpush1.msra.mxu0 0.0
        %727 = vmatprep.subr.mxu0 0.0
        %728 = vmatpush1.msra.mxu0 0.0
        %729 = vmatprep.mubr.f32.mxu0 0.0
        %730 = vmatmul.mubr.f32.gmra.mrb[0].mxu0 %v654
        %v731 = vpop.f32.mrb[0].mxu0
        %v732 = vadd.f32 %v635, %v731
        %v733 = vpop.f32.mrb[0].mxu0
        %734 = vmatprep.mubr.f32.mxu0 0.0
        %735 = vmatmul.mubr.f32.gmra.mrb[0].mxu0 %v657
        %v736 = vpop.f32.mrb[0].mxu0
        %v737 = vadd.f32 %v640, %v736
        %v738 = vpop.f32.mrb[0].mxu0
        %739 = vmatprep.mubr.f32.mxu0 0.0
        %740 = vmatmul.mubr.f32.gmra.mrb[0].mxu0 %v660
        %v741 = vpop.f32.mrb[0].mxu0
        %v742 = vadd.f32 %v645, %v741
        %v743 = vpop.f32.mrb[0].mxu0
        %744 = vmatprep.mubr.f32.mxu0 0.0
        %745 = vmatmul.mubr.f32.gmra.mrb[0].mxu0 %v663
        %v746 = vpop.f32.mrb[0].mxu0
        %v747 = vadd.f32 %v650, %v746
        %v748 = vpop.f32.mrb[0].mxu0
        %749 = vdwg.mxu0
        %v750 = vmax.f32 %v732, 0.0
        %v751 = vmax.f32 %v737, 0.0
        %v752 = vmax.f32 %v742, 0.0
        %v753 = vmax.f32 %v747, 0.0
        %v754 = vld [vmem:[%s7] sm:$0xff]
        %v755 = vld [vmem:[%s7 + $0x8] sm:$0xff]
        %v756 = vld [vmem:[%s7 + $0x10] sm:$0xff]
        %v757 = vld [vmem:[%s7 + $0x18] sm:$0xff]
        %v758 = vld [vmem:[#allocation2] sm:$0x1]
        %760 = vset.pattern.permute.xlu0 0
        %761 = vperm.xlu0 %760, %v754
        %v762 = vpop.permute.xlu0 %761
        %765 = vset.pattern.permute.xlu0 0
        %766 = vperm.xlu0 %765, %v755
        %v767 = vpop.permute.xlu0 %766
        %770 = vset.pattern.permute.xlu0 0
        %771 = vperm.xlu0 %770, %v756
        %v772 = vpop.permute.xlu0 %771
        %775 = vset.pattern.permute.xlu0 0
        %776 = vperm.xlu0 %775, %v757
        %v777 = vpop.permute.xlu0 %776
        %v779 = vmul.f32 %v750, %v762
        %v780 = vmul.f32 %v751, %v767
        %v781 = vmul.f32 %v752, %v772
        %v782 = vmul.f32 %v753, %v777
        %v783 = vadd.f32 %v779, %v780
        %v784 = vadd.f32 %v783, %v781
        %v785 = vadd.f32 %v784, %v782
        %v786 = vrot.slane %v785, 4
        %v787 = vadd.f32 %v785, %v786
        %v788 = vrot.slane %v787, 2
        %v789 = vadd.f32 %v787, %v788
        %v790 = vrot.slane %v789, 1
        %v791 = vadd.f32 %v789, %v790
        %793 = vset.pattern.permute.xlu0 0
        %794 = vperm.xlu0 %793, %v758
        %v795 = vpop.permute.xlu0 %794
        %v797 = vlaneseq
        %v798 = vshrl.u32 %v797, 7
        %v799 = vsub.s32 0, %v798
        %v800 = vrot.slane %v795, %v799
        %v801 = vadd.f32 %v791, %v800
        %802 = vst [vmem:[%s369] sm:$0x1] %v801
        %s803 = sand.u32 %s227, 1
        %s804 = scalar_lea.sflag [#allocation5], %s803
        %s805 = sand.u32 %s227, 1
        %s806 = scalar_lea.vmem [#allocation4], %s805
        // Predicated region
        $region102: #{tpu_custom_call.1} parent=89 // pred_check
          %p807 = pneg %p237
        $region103: #{tpu_custom_call.1} parent=89 // pred_check_branch
          %809 = sbr.rel (%p807) target = $region105
        $region104: #{tpu_custom_call.1} parent=89 // pred_region
          %s811 = ssub.s32 16, 16
          %812 = vsyncadd %s804, %s811
          %s813 = smul.addr %s25, 16
          %s814 = scalar_lea.hbm %s9, %s813
          %s816 = sshll.u32 %s806, 4
          %s817 = int_to_ptr.vmem [resolvable:$true] %s816
          %819 = dma.vmem_to_hbm [thread:$0]  %s817, 16, %s814, %s804
        $region105: #{tpu_custom_call.1} parent=89 // pred_fallthru
          _
      $region90: #{tpu_custom_call.1} parent=5 // pred_fallthru
        _
      %p820 = scmp.le.s32.totalorder 2, %s20
      // Predicated region
      $region106: #{tpu_custom_call.1} parent=5 // pred_check
        %p821 = pneg %p820
      $region107: #{tpu_custom_call.1} parent=5 // pred_check_branch
        %823 = sbr.rel (%p821) target = $region109
      $region108: #{tpu_custom_call.1} parent=5 // pred_region
        %s824 = ssub.s32 %s20, 2
        // Predicated region
        $region110: #{tpu_custom_call.1} parent=108 // pred_check
          %p825 = pneg %p243
        $region111: #{tpu_custom_call.1} parent=108 // pred_check_branch
          %827 = sbr.rel (%p825) target = $region113
        $region112: #{tpu_custom_call.1} parent=108 // pred_region
          %s828 = sand.u32 %s228, 1
          %s829 = scalar_lea.sflag [#allocation5], %s828
          %s830 = sand.u32 %s228, 1
          %s831 = scalar_lea.vmem [#allocation4], %s830
          %832 = dma.done %s829, 16
        $region113: #{tpu_custom_call.1} parent=108 // pred_fallthru
          _
      $region109: #{tpu_custom_call.1} parent=5 // pred_fallthru
        _
    $region6: #{tpu_custom_call.1} parent=1 // loop_footer
      %s24 = sadd.s32 1, %s20
    $region7: #{tpu_custom_call.1} parent=1 // loop_footer_branch
      %19 = sbr.rel target = $region3
    $region8: #{tpu_custom_call.1} parent=1 // loop_exit
      _
    %833 = vsyncpa [#allocation5], 1
    %s834 = scalar_lea.sflag [#allocation5], 1
    %835 = vsyncpa %s834, 1

</llo_original>
